<compile_context>
chip_gen: v7x
topology: tpu7x:2x2x1
jax: 0.10.0
libtpu: 0.0.40
codegen_flags: <defaults>
</compile_context>

<pallas_src>
import math
import functools

import jax
import jax.numpy as jnp
from jax.experimental import pallas as pl
from jax.experimental.pallas import tpu as pltpu

_LANE = 128
_SUBLANE = 8
_MIN_GRID_STEPS = 8          # target grid steps for pipelining / megacore
_MIN_BLOCK_BYTES = 1 << 20   # don't shrink tiles below ~1 MiB chasing steps


def _cdiv(a: int, b: int) -> int:
    return -(-a // b)


def _round_up(x: int, m: int) -> int:
    return _cdiv(x, m) * m


def _dynamic_value(shape) -> float:
    """Per-sample dynamic `value`, exactly as in the PyTorch forward."""
    nd = len(shape)
    if nd in (2, 3):
        return max(2.0, 8.0 / math.log10(shape[-1] ** 0.5))
    if nd == 4:
        h, w = shape[2], shape[3]
        return max(2.0, 8.0 / math.log10((h * w) ** 0.5))
    raise NotImplementedError("NormAbsMaxDynamic: only 2D/3D/4D inputs.")


def _vmem_capacity_bytes() -> int:
    """Physical VMEM per core (128 MiB v5e/v6e, 64 MiB v7x); safe fallback."""
    try:
        info = pltpu.get_tpu_info()
        cap = int(getattr(info, "vmem_capacity_bytes", 0))
        if cap > 0:
            return cap
    except Exception:
        pass
    return 64 << 20  # conservative (v7x-sized)


def _pick_resident_tile_n(n: int, rows_cap: int, row_bytes: int) -> int:
    """tile_n for the resident path: <= rows_cap, multiple of 8 (or == n),
    shrunk for pipelining/megacore steps while keeping blocks >= ~1 MiB."""
    target = min(n, rows_cap)
    if n >= 2 * _SUBLANE:
        min_rows = max(_SUBLANE, _cdiv(_MIN_BLOCK_BYTES, max(1, row_bytes)))
        target = min(target, max(min_rows, _cdiv(n, _MIN_GRID_STEPS)))
    if target >= n:
        return n
    return max(_SUBLANE, (target // _SUBLANE) * _SUBLANE)


# ----------------------------------------------------------------------------
# Kernels
# ----------------------------------------------------------------------------
def _resident_kernel(x_ref, o_ref, *, value, eps):
    """Whole rows resident: fused abs-max + normalize. Block = (tile_n, d)."""
    x = x_ref[...]                                                # (tn, d)
    m = jnp.max(jnp.abs(x), axis=1, keepdims=True).astype(jnp.float32)
    inv = 1.0 / jnp.maximum(m / value, eps)                       # (tn, 1) f32
    o_ref[...] = (x.astype(jnp.float32) * inv).astype(o_ref.dtype)


def _absmax_reduce_kernel(x_ref, inv_ref, *, value, eps, d, tile_d, ragged_d):
    """Pass A: streamed per-row abs-max; inv_ref doubles as the accumulator
    (output block revisited along the reduction axis), finalized at last k."""
    k = pl.program_id(1)

    @pl.when(k == 0)
    def _init():
        inv_ref[...] = jnp.zeros_like(inv_ref)

    xa = jnp.abs(x_ref[...]).astype(jnp.float32)                  # (tn, td)
    if ragged_d:  # static: mask garbage in the ragged tail of the last D tile
        col = k * tile_d + jax.lax.broadcasted_iota(jnp.int32, xa.shape, 1)
        xa = jnp.where(col < d, xa, 0.0)
    inv_ref[...] = jnp.maximum(inv_ref[...],
                               jnp.max(xa, axis=1, keepdims=True))

    @pl.when(k == pl.num_programs(1) - 1)
    def _finalize():
        inv_ref[...] = 1.0 / jnp.maximum(inv_ref[...] / value, eps)


def _scale_kernel(x_ref, inv_ref, o_ref):
    """Pass B: streamed broadcast multiply by the per-row reciprocal."""
    o_ref[...] = (x_ref[...].astype(jnp.float32) * inv_ref[...]).astype(o_ref.dtype)


# ----------------------------------------------------------------------------
# Wrapper
# ----------------------------------------------------------------------------
def norm_absmax_dynamic(x, eps: float = 0.01, *, max_block_bytes: int | None = None):
    """Dynamic NormAbsMax (value=None case) for 2D/3D/4D inputs."""
    value = _dynamic_value(x.shape)

    n = x.shape[0]
    d = int(math.prod(x.shape[1:]))
    isz = x.dtype.itemsize
    elems = n * d

    vmem_cap = _vmem_capacity_bytes()
    vmem_limit = (vmem_cap * 3) // 4
    # ~6 live f32-sized copies of a block worst case (in/out double buffers +
    # f32 temporaries)  ->  ~16 MiB blocks on v5e/v6e, ~8 MiB on v7x.
    if max_block_bytes is None:
        max_block_elems = max(1, vmem_limit // (6 * 4))
    else:
        max_block_elems = max(1, max_block_bytes // 4)

    x2 = x.reshape(n, d)                      # contiguous view: free
    out_shape = jax.ShapeDtypeStruct((n, d), x.dtype)

    rows_cap = max_block_elems // d           # rows per block under budget

    if rows_cap >= min(_SUBLANE, n):
        # ---------- single pass: whole rows resident, tile over N only ----------
        tile_n = _pick_resident_tile_n(n, rows_cap, d * isz)
        out2 = pl.pallas_call(
            functools.partial(_resident_kernel, value=value, eps=eps),
            out_shape=out_shape,
            grid=(_cdiv(n, tile_n),),
            in_specs=[pl.BlockSpec((tile_n, d), lambda i: (i, 0))],
            out_specs=pl.BlockSpec((tile_n, d), lambda i: (i, 0)),
            compiler_params=pltpu.CompilerParams(
                dimension_semantics=("parallel",),
                vmem_limit_bytes=vmem_limit),
            cost_estimate=pl.CostEstimate(
                flops=3 * elems, transcendentals=n,
                bytes_accessed=2 * elems * isz),
        )(x2)
    else:
        # ---------- two passes: streamed abs-max reduce, then normalize ----------
        tile_n = n if n < _SUBLANE else _SUBLANE
        cols_cap = max(_LANE, (max_block_elems // tile_n) // _LANE * _LANE)
        cols_target = _round_up(_cdiv(d, _MIN_GRID_STEPS), _LANE)
        tile_d = max(_LANE, min(cols_cap, cols_target))
        tile_d = min(tile_d, _round_up(d, _LANE))
        grid = (_cdiv(n, tile_n), _cdiv(d, tile_d))
        ragged_d = (d % tile_d) != 0

        inv = pl.pallas_call(
            functools.partial(_absmax_reduce_kernel, value=value, eps=eps,
                              d=d, tile_d=tile_d, ragged_d=ragged_d),
            out_shape=jax.ShapeDtypeStruct((n, 1), jnp.float32),
            grid=grid,
            in_specs=[pl.BlockSpec((tile_n, tile_d), lambda i, k: (i, k))],
            out_specs=pl.BlockSpec((tile_n, 1), lambda i, k: (i, 0)),
            compiler_params=pltpu.CompilerParams(
                dimension_semantics=("parallel", "arbitrary"),
                vmem_limit_bytes=vmem_limit),
            cost_estimate=pl.CostEstimate(
                flops=2 * elems, transcendentals=n,
                bytes_accessed=elems * isz + n * 4),
        )(x2)

        out2 = pl.pallas_call(
            _scale_kernel,
            out_shape=out_shape,
            grid=grid,
            in_specs=[pl.BlockSpec((tile_n, tile_d), lambda i, k: (i, k)),
                      pl.BlockSpec((tile_n, 1), lambda i, k: (i, 0))],
            out_specs=pl.BlockSpec((tile_n, tile_d), lambda i, k: (i, k)),
            compiler_params=pltpu.CompilerParams(
                dimension_semantics=("parallel", "parallel"),
                vmem_limit_bytes=vmem_limit),
            cost_estimate=pl.CostEstimate(
                flops=elems, transcendentals=0,
                bytes_accessed=2 * elems * isz + n * 4),
        )(x2, inv)

    return out2.reshape(x.shape)


# ----------------------------------------------------------------------------
# Reference (pure JAX) + self-test
# ----------------------------------------------------------------------------
def _reference(x, eps: float = 0.01):
    dim = {2: (1,), 3: (1, 2), 4: (1, 2, 3)}[x.ndim]
    value = _dynamic_value(x.shape)
    xf = x.astype(jnp.float32)
    m = jnp.max(jnp.abs(xf), axis=dim, keepdims=True)
    m = jnp.maximum(m / value, eps)
    return (xf / m).astype(x.dtype)


if __name__ == "__main__":
    key = jax.random.PRNGKey(0)
    k1, k2, k3, k4 = jax.random.split(key, 4)

    # 1) Main demo shape (NCHW): resident single-pass path.
    x = jax.random.normal(k1, (2, 4, 16, 16), dtype=jnp.float32)
    out = jax.block_until_ready(norm_absmax_dynamic(x))
    ref = _reference(x)
    assert out.shape == x.shape and out.dtype == x.dtype
    assert jnp.allclose(out, ref, atol=1e-5, rtol=1e-5), "resident path mismatch"

    # 2) Force the two-pass path (tiny block budget), with ragged N and D tiles.
    x_big = jax.random.normal(k2, (10, 5, 17, 17), dtype=jnp.float32)  # d = 1445
    out_big = jax.block_until_ready(
        norm_absmax_dynamic(x_big, max_block_bytes=4096))
    assert jnp.allclose(out_big, _reference(x_big), atol=1e-5, rtol=1e-5), \
        "two-pass path mismatch"

    # 3) 3-D input, feature size not a multiple of 128 (full-dim block, no pad).
    x_odd = jax.random.normal(k3, (4, 7, 33), dtype=jnp.float32)
    out_odd = jax.block_until_ready(norm_absmax_dynamic(x_odd))
    assert jnp.allclose(out_odd, _reference(x_odd), atol=1e-5, rtol=1e-5), \
        "non-128-multiple path mismatch"

    # 4) bfloat16 input (internal compute stays f32).
    x_bf = jax.random.normal(k4, (2, 8, 32, 32), dtype=jnp.bfloat16)
    out_bf = jax.block_until_ready(norm_absmax_dynamic(x_bf))
    assert out_bf.dtype == jnp.bfloat16
    assert jnp.allclose(out_bf.astype(jnp.float32),
                        _reference(x_bf).astype(jnp.float32),
                        atol=2e-2, rtol=2e-2), "bf16 path mismatch"

    print("KERNEL_OK")
</pallas_src>

<mosaic_0001>
module attributes {stable_mosaic.version = 11 : i64} {
  func.func @_resident_kernel(%arg0: i32, %arg1: memref<2x1024xf32, #tpu.memory_space<vmem>>, %arg2: memref<2x1024xf32, #tpu.memory_space<vmem>>) attributes {dimension_semantics = [#tpu.dimension_semantics<parallel>], iteration_bounds = array<i64: 1>, scalar_prefetch = 0 : i64, scratch_operands = 0 : i64, tpu.core_type = #tpu.core_type<tc>, window_params = [{transform_indices = @transform_0, window_bounds = array<i64: 2, 1024>}, {transform_indices = @transform_1, window_bounds = array<i64: 2, 1024>}]} {
    %c0 = arith.constant 0 : index
    %c0_0 = arith.constant 0 : index
    %0 = vector.load %arg1[%c0, %c0_0] : memref<2x1024xf32, #tpu.memory_space<vmem>>, vector<2x1024xf32>
    %1 = math.absf %0 : vector<2x1024xf32>
    %cst = arith.constant dense<0xFF800000> : vector<2xf32>
    %2 = vector.multi_reduction <maximumf>, %1, %cst [1] : vector<2x1024xf32> to vector<2xf32>
    %3 = vector.shape_cast %2 : vector<2xf32> to vector<2x1xf32>
    %cst_1 = arith.constant 6.64385605 : f32
    %4 = vector.broadcast %cst_1 : f32 to vector<2x1xf32>
    %5 = arith.divf %3, %4 : vector<2x1xf32>
    %cst_2 = arith.constant 0.00999999977 : f32
    %6 = vector.broadcast %cst_2 : f32 to vector<2x1xf32>
    %7 = arith.maximumf %5, %6 : vector<2x1xf32>
    %cst_3 = arith.constant 1.000000e+00 : f32
    %8 = vector.broadcast %cst_3 : f32 to vector<2x1xf32>
    %9 = arith.divf %8, %7 : vector<2x1xf32>
    %10 = vector.broadcast %9 : vector<2x1xf32> to vector<2x1024xf32>
    %11 = arith.mulf %0, %10 : vector<2x1024xf32>
    %c0_4 = arith.constant 0 : index
    %c0_5 = arith.constant 0 : index
    %12 = vector.load %arg2[%c0_4, %c0_5] : memref<2x1024xf32, #tpu.memory_space<vmem>>, vector<2x1024xf32>
    tpu.vector_store %arg2[%c0_4, %c0_5], %11 {strides = array<i32>} : memref<2x1024xf32, #tpu.memory_space<vmem>>, vector<2x1024xf32>,
    return
  }
  func.func @transform_0(%arg0: i32) -> (i32, i32) {
    %c0_i32 = arith.constant 0 : i32
    %c0_i32_0 = arith.constant 0 : i32
    return %arg0, %c0_i32 : i32, i32
  }
  func.func @transform_1(%arg0: i32) -> (i32, i32) {
    %c0_i32 = arith.constant 0 : i32
    %c0_i32_0 = arith.constant 0 : i32
    return %arg0, %c0_i32 : i32, i32
  }
}

</mosaic_0001>

<llo_original>
// kernel: tpu_custom_call.1
$region0: #{tpu_custom_call.1}
  #allocation0 [shape = 'u32[]', space=smem, size = 0x4, offset = 0x4, fixed_abs, tag = 'smem constant byte address 0x4 - core index']
  #allocation1 [shape = 'u32[144,128]{1,0:T(1,128)}', space=vmem, size = 0x12000, scoped, tag = 'internal scratch']
  %s0 = inlined_call_operand.hbm [shape: f32[2,1024], index: 0, kind: input, shape index: {}]
  %s1 = inlined_call_operand.hbm [shape: f32[2,1024], index: 1, kind: output, shape index: {}]
  %s2 = sld [smem:[#allocation0]]
  $region18: #{tpu_custom_call.1} parent=0
    _
  %s4 = ssub.s32 1, %s2
  %s5 = scalar_select 0, %s4, %s2
  $region1: #{tpu_custom_call.1} parent=0
    #allocation2 [shape = 'u8[8192]{0}', space=vmem, size = 0x2000, scoped, tag = 'input window, operand 0, single buffered']
    #allocation3 [shape = 's32[1]{0}', space=sflag, size = 0x4, scoped, tag = 'scoped memory for tpu_custom_call.1']
    #allocation4 [shape = 's32[1]{0}', space=sflag, size = 0x4, scoped, tag = 'scoped memory for tpu_custom_call.1']
    #allocation5 [shape = 'u8[8192]{0}', space=vmem, size = 0x2000, scoped, tag = 'output window, operand 0, single buffered']
    %6 = vsyncpa [#allocation3], 0
    %7 = vsyncpa [#allocation4], 0
    // Predicated region
    $region2: #{tpu_custom_call.1} parent=1 // pred_check
      _
    $region3: #{tpu_custom_call.1} parent=1 // pred_check_branch
      %9 = sbr.rel (0) target = $region5
    $region4: #{tpu_custom_call.1} parent=1 // pred_region
      %s11 = ssub.s32 256, 256
      %12 = vsyncadd [#allocation3], %s11
      %s14 = sshll.u32 [#allocation2], 4
      %s15 = int_to_ptr.vmem [resolvable:$true] %s14
      %17 = dma.hbm_to_vmem [thread:$0]  %s0, 256, %s15, [#allocation3]
    $region5: #{tpu_custom_call.1} parent=1 // pred_fallthru
      _
    // Predicated region
    $region6: #{tpu_custom_call.1} parent=1 // pred_check
      _
    $region7: #{tpu_custom_call.1} parent=1 // pred_check_branch
      %19 = sbr.rel (0) target = $region9
    $region8: #{tpu_custom_call.1} parent=1 // pred_region
      %20 = dma.done [#allocation3], 256
    $region9: #{tpu_custom_call.1} parent=1 // pred_fallthru
      _
    %v21 = vld [vmem:[#allocation2] sm:$0xff]
    %v22 = vld [vmem:[#allocation2 + $0x8] sm:$0xff]
    %v23 = vand.u32 2147483647, %v21
    %v24 = vand.u32 2147483647, %v22
    %v27 = vcombine.high %v23, %v23
    %v29 = vunpack.c.l.s4 1983009808
    %v30 = vunpack.c.0.s8 %v29
    %v31 = vlaneseq
    %v32 = vshrl.u32 %v31, 7
    %v33 = vsub.s32 %v30, %v32
    %v34 = vrot.slane %v23, %v33
    %v36 = vunpack.c.l.s4 1983009808
    %v37 = vunpack.c.0.s8 %v36
    %v38 = vlaneseq
    %v39 = vshrl.u32 %v38, 7
    %v40 = vsub.s32 %v37, %v39
    %v41 = vrot.slane %v27, %v40
    %v42 = vcombine.high %v34, %v34
    %v43 = vcombine.high %v41, %v41
    %v44 = vcombine.high %v24, %v24
    %v46 = vunpack.c.l.s4 1983009808
    %v47 = vunpack.c.0.s8 %v46
    %v48 = vlaneseq
    %v49 = vshrl.u32 %v48, 7
    %v50 = vsub.s32 %v47, %v49
    %v51 = vrot.slane %v24, %v50
    %v53 = vunpack.c.l.s4 1983009808
    %v54 = vunpack.c.0.s8 %v53
    %v55 = vlaneseq
    %v56 = vshrl.u32 %v55, 7
    %v57 = vsub.s32 %v54, %v56
    %v58 = vrot.slane %v44, %v57
    %v59 = vcombine.high %v51, %v51
    %v60 = vcombine.high %v58, %v58
    %vm69 = vcmask 1041408
    %v70 = vsel %vm69, %v34, -inf
    %v71 = vsel %vm69, %v42, -inf
    %v72 = vsel %vm69, %v41, -inf
    %v73 = vsel %vm69, %v43, -inf
    %v74 = vsel %vm69, %v51, -inf
    %v75 = vmax.f32 %v70, %v74
    %v76 = vsel %vm69, %v59, -inf
    %v77 = vmax.f32 %v71, %v76
    %v78 = vsel %vm69, %v58, -inf
    %v79 = vmax.f32 %v72, %v78
    %v80 = vsel %vm69, %v60, -inf
    %v81 = vmax.f32 %v73, %v80
    %v82 = vmax.f32 %v75, %v77
    %v83 = vmax.f32 %v79, %v81
    %v84 = vmax.f32 %v82, %v83
    %85 = vmax.xlane.f32.xlu0 %v84
    %v86 = vpop.xlane.xlu0 %85
    %v87 = vrcp.pop 6.643856
    %v88 = vmul.f32 %v86, %v87
    %v89 = vmax.f32 %v88, 0.01
    %v90 = vrcp.pop %v89
    %v91 = vmul.f32 1.0, %v90
    %v94 = vunpack.c.l.s4 269488144
    %v95 = vunpack.c.0.s8 %v94
    %v96 = vlaneseq
    %v97 = vshrl.u32 %v96, 7
    %v98 = vsub.s32 %v95, %v97
    %v99 = vrot.slane %v91, %v98
    %v101 = vmul.f32 %v21, %v99
    %v102 = vmul.f32 %v22, %v99
    %103 = vst [vmem:[#allocation5] sm:$0xff] %v101
    %104 = vst [vmem:[#allocation5 + $0x8] sm:$0xff] %v102
    // Predicated region
    $region10: #{tpu_custom_call.1} parent=1 // pred_check
      _
    $region11: #{tpu_custom_call.1} parent=1 // pred_check_branch
      %106 = sbr.rel (0) target = $region13
    $region12: #{tpu_custom_call.1} parent=1 // pred_region
      %s108 = ssub.s32 256, 256
      %109 = vsyncadd [#allocation4], %s108
      %s111 = sshll.u32 [#allocation5], 4
      %s112 = int_to_ptr.vmem [resolvable:$true] %s111
      %114 = dma.vmem_to_hbm [thread:$0]  %s112, 256, %s1, [#allocation4]
    $region13: #{tpu_custom_call.1} parent=1 // pred_fallthru
      _
    // Predicated region
    $region14: #{tpu_custom_call.1} parent=1 // pred_check
      _
    $region15: #{tpu_custom_call.1} parent=1 // pred_check_branch
      %116 = sbr.rel (0) target = $region17
    $region16: #{tpu_custom_call.1} parent=1 // pred_region
      %117 = dma.done [#allocation4], 256
    $region17: #{tpu_custom_call.1} parent=1 // pred_fallthru
      _
    %118 = vsyncpa [#allocation3], 1
    %119 = vsyncpa [#allocation4], 1

</llo_original>
